<compile_context>
chip_gen: v7x
topology: tpu7x:2x2x1
jax: 0.10.0
libtpu: 0.0.40
codegen_flags: <defaults>
</compile_context>

<pallas_src>
import jax
import jax.numpy as jnp
from jax import lax
from jax.experimental import pallas as pl
from jax.experimental.pallas import tpu as pltpu

KSIZE = 9
PAD = 4


def frameatt_kernel(x_ref, w_ref, b_ref, o_ref):
    # x_ref: VMEM (bb, C, T, S)  -- native layout block, input dtype (f32/bf16)
    # w_ref: VMEM (2T, T) f32    -- fused Toeplitz conv weight [avg rows; max rows]
    # b_ref: SMEM (1,) f32       -- conv bias
    # o_ref: VMEM (bb, T)        -- (middle size-1 dim squeezed by the BlockSpec)
    x = x_ref[...]
    _, c, _, s = x.shape

    # Per-frame average: accumulate in f32 regardless of input dtype (no
    # full-block f32 temp is materialized; the combine over C is elementwise).
    sum_c = jnp.sum(x, axis=1, dtype=jnp.float32)        # (bb, T, S)
    avg = jnp.sum(sum_c, axis=-1) * (1.0 / (c * s))      # (bb, T)  lane reduce

    # Per-frame max: exact in the input dtype; cast only the tiny (bb, T) result.
    mx = jnp.max(jnp.max(x, axis=1), axis=-1).astype(jnp.float32)   # (bb, T)

    # 9-tap conv along T folded into a single small MXU matmul.
    pooled = jnp.concatenate([avg, mx], axis=-1)         # (bb, 2T)
    out = jnp.dot(pooled, w_ref[...],
                  preferred_element_type=jnp.float32,
                  precision=lax.Precision.HIGHEST) + b_ref[0]
    o_ref[...] = out.astype(o_ref.dtype)


def _fused_toeplitz(conv_w, T):
    """Fold Conv2d(2->1, k=(9,1), pad=(4,0)) into one (2T, T) matmul weight.

    out[b, t] = bias + sum_i avg[b, i] * W[i, t] + sum_i max[b, i] * W[T + i, t]
    with W[i, t] = taps[ch, i - t + PAD] when 0 <= i - t + PAD < KSIZE else 0,
    i.e. exactly PyTorch cross-correlation with zero padding along T.
    """
    taps = conv_w.reshape(2, KSIZE).astype(jnp.float32)   # row0 = avg ch, row1 = max ch
    i = jnp.arange(T)[:, None]          # pooled-map index
    t = jnp.arange(T)[None, :]          # output-frame index
    k = i - t + PAD                     # tap index
    valid = (k >= 0) & (k < KSIZE)
    kc = jnp.clip(k, 0, KSIZE - 1)
    w = jnp.where(valid[None, :, :], taps[:, kc], 0.0)    # (2, T, T)
    return w.reshape(2 * T, T)


def _round_up(v, m):
    return -(-v // m) * m


def _vmem_capacity_bytes():
    try:
        info_fn = getattr(pltpu, "get_tpu_info", None)
        if info_fn is not None:
            cap = getattr(info_fn(), "vmem_capacity_bytes", None)
            if cap:
                return int(cap)
    except Exception:
        pass
    return 64 * 1024 * 1024     # conservative fallback (v7x per-core VMEM); perf-only


def _plan_blocks(B, C, T, S, itemsize):
    """Pick the batch block bb and an honest vmem limit.

    Blocks of ~1-2 MiB already reach ~85% of HBM roofline; what matters is
    keeping >= min(B, 8) grid steps so the software pipeline has work to
    overlap and the "parallel" batch axis shards across both v7x TensorCores.
    """
    sub = 8 if itemsize >= 4 else 8 * (4 // itemsize)     # 8 f32 / 16 bf16 / 32 int8
    t_pad = _round_up(T, sub)
    s_pad = _round_up(S, 128)
    per_row = C * t_pad * s_pad * itemsize                # VMEM bytes per batch row

    target_block = 2 * 1024 * 1024
    bb = max(1, min(B, target_block // max(per_row, 1)))
    bb = min(bb, max(1, B // min(B, 8)))                  # keep >= min(B, 8) grid steps
    while B % bb:
        bb -= 1

    # Fixed residents: fused (2T, T) f32 weight and the output block (both
    # double-buffered by the pipeline) plus the in-kernel reduce temps.
    w_bytes = _round_up(2 * T, 8) * _round_up(T, 128) * 4
    cap = _vmem_capacity_bytes()
    budget = (cap * 3) // 4                               # headroom for compiler scratch

    def needed(bb_):
        out_bytes = _round_up(bb_, 8) * _round_up(T, 128) * 4
        temps = bb_ * _round_up(T, 8) * s_pad * (4 + itemsize)   # f32 sum + dtype max
        return 2 * bb_ * per_row + 2 * w_bytes + 2 * out_bytes + temps

    while bb > 1 and needed(bb) > budget:
        bb -= 1
        while B % bb:
            bb -= 1

    vmem_limit = int(min(budget, max(32 * 1024 * 1024, needed(bb) + 4 * 1024 * 1024)))
    return bb, vmem_limit


def frame_att(x, conv_w, conv_b):
    """x: (B, C, T, S); conv_w: (1, 2, 9, 1); conv_b: (1,). Returns (B, 1, T, 1)."""
    B, C, T, S = x.shape

    w_fused = _fused_toeplitz(conv_w, T)                  # (2T, T) f32, tiny
    b1 = conv_b.reshape(1).astype(jnp.float32)            # (1,) SMEM scalar

    bb, vmem_limit = _plan_blocks(B, C, T, S, x.dtype.itemsize)

    out = pl.pallas_call(
        frameatt_kernel,
        out_shape=jax.ShapeDtypeStruct((B, 1, T), jnp.float32),
        grid_spec=pl.GridSpec(
            grid=(B // bb,),
            in_specs=[
                # Native-layout batch block; last two dims cover the full (T, S).
                pl.BlockSpec((bb, C, T, S), lambda bi: (bi, 0, 0, 0)),
                # Constant index_map: weight block stays resident across steps.
                pl.BlockSpec((2 * T, T), lambda bi: (0, 0)),
                pl.BlockSpec(memory_space=pltpu.MemorySpace.SMEM),
            ],
            # Squeeze the size-1 middle dim; kernel sees a (bb, T) output slab.
            out_specs=pl.BlockSpec((bb, None, T), lambda bi: (bi, 0, 0)),
        ),
        compiler_params=pltpu.CompilerParams(
            dimension_semantics=("parallel",),   # batch blocks are independent
            vmem_limit_bytes=vmem_limit,
        ),
    )(x, w_fused, b1)

    return out.reshape(B, 1, T, 1)               # free layout plumbing


def frame_att_reference(x, conv_w, conv_b):
    # Pure-JAX reference reproducing the PyTorch forward exactly.
    avg = jnp.mean(x, axis=(1, 3))                       # (B, T)
    mx = jnp.max(x, axis=(1, 3))                         # (B, T)
    pooled = jnp.stack([avg, mx], axis=1)[..., None]     # (B, 2, T, 1)
    out = lax.conv_general_dilated(
        pooled, conv_w, window_strides=(1, 1),
        padding=((PAD, PAD), (0, 0)),
        dimension_numbers=("NCHW", "OIHW", "NCHW"),
        precision=lax.Precision.HIGHEST)
    return out + conv_b.reshape(1, 1, 1, 1)


if __name__ == "__main__":
    key = jax.random.PRNGKey(0)
    kx, kw, kb = jax.random.split(key, 3)

    B, C, T, S = 2, 4, 16, 16
    x = jax.random.normal(kx, (B, C, T, S), jnp.float32)

    # Deterministic Conv2d(2, 1, kernel_size=(9,1)) parameters (PyTorch-style bound).
    fan_in = 2 * KSIZE * 1
    bound = 1.0 / (fan_in ** 0.5)
    conv_w = jax.random.uniform(kw, (1, 2, KSIZE, 1), jnp.float32, -bound, bound)
    conv_b = jax.random.uniform(kb, (1,), jnp.float32, -bound, bound)

    out = jax.block_until_ready(frame_att(x, conv_w, conv_b))
    ref = frame_att_reference(x, conv_w, conv_b)

    assert out.shape == (B, 1, T, 1), out.shape
    max_err = float(jnp.abs(out - ref).max())
    assert jnp.allclose(out, ref, atol=1e-4, rtol=1e-4), max_err
    print("KERNEL_OK")
</pallas_src>

<mosaic_0001>
module attributes {stable_mosaic.version = 11 : i64} {
  func.func @frameatt_kernel(%arg0: i32, %arg1: memref<1x4x16x16xf32, #tpu.memory_space<vmem>>, %arg2: memref<32x16xf32, #tpu.memory_space<vmem>>, %arg3: memref<1xf32, #tpu.memory_space<smem>>, %arg4: memref<1x1x16xf32, #tpu.memory_space<vmem>>) attributes {dimension_semantics = [#tpu.dimension_semantics<parallel>], iteration_bounds = array<i64: 2>, scalar_prefetch = 0 : i64, scratch_operands = 0 : i64, tpu.core_type = #tpu.core_type<tc>, window_params = [{transform_indices = @transform_0, window_bounds = array<i64: 1, 4, 16, 16>}, {pipeline_mode = #tpu.pipeline_mode<synchronous>, transform_indices = @transform_1, window_bounds = array<i64: 32, 16>}, {transform_indices = @transform_2, window_bounds = array<i64: 1>}, {transform_indices = @transform_3, window_bounds = array<i64: 1, 1, 16>}]} {
    %c0 = arith.constant 0 : index
    %c0_0 = arith.constant 0 : index
    %c0_1 = arith.constant 0 : index
    %c0_2 = arith.constant 0 : index
    %0 = vector.load %arg1[%c0, %c0_0, %c0_1, %c0_2] : memref<1x4x16x16xf32, #tpu.memory_space<vmem>>, vector<1x4x16x16xf32>
    %cst = arith.constant dense<0.000000e+00> : vector<1x16x16xf32>
    %1 = vector.multi_reduction <add>, %0, %cst [1] : vector<1x4x16x16xf32> to vector<1x16x16xf32>
    %cst_3 = arith.constant dense<0.000000e+00> : vector<1x16xf32>
    %2 = vector.multi_reduction <add>, %1, %cst_3 [2] : vector<1x16x16xf32> to vector<1x16xf32>
    %cst_4 = arith.constant 1.562500e-02 : f32
    %3 = vector.broadcast %cst_4 : f32 to vector<1x16xf32>
    %4 = arith.mulf %2, %3 : vector<1x16xf32>
    %cst_5 = arith.constant dense<0xFF800000> : vector<1x16x16xf32>
    %5 = vector.multi_reduction <maximumf>, %0, %cst_5 [1] : vector<1x4x16x16xf32> to vector<1x16x16xf32>
    %cst_6 = arith.constant dense<0xFF800000> : vector<1x16xf32>
    %6 = vector.multi_reduction <maximumf>, %5, %cst_6 [2] : vector<1x16x16xf32> to vector<1x16xf32>
    %7 = tpu.concatenate %4, %6 in 1 : vector<1x16xf32>, vector<1x16xf32> -> vector<1x32xf32>
    %c0_7 = arith.constant 0 : index
    %c0_8 = arith.constant 0 : index
    %8 = vector.load %arg2[%c0_7, %c0_8] : memref<32x16xf32, #tpu.memory_space<vmem>>, vector<32x16xf32>
    %cst_9 = arith.constant dense<0.000000e+00> : vector<1x16xf32>
    %9 = tpu.matmul %7, %8, %cst_9 {dimension_numbers = #tpu.dot_dimension_numbers<[1], [0], [0], [1], [0, 0, 1, 1], [], []>, precision = #tpu.contract_precision<fp32>} : vector<1x32xf32>, vector<32x16xf32>, vector<1x16xf32> -> vector<1x16xf32>
    %c0_10 = arith.constant 0 : index
    %10 = memref.load %arg3[%c0_10] : memref<1xf32, #tpu.memory_space<smem>>
    %11 = vector.broadcast %10 : f32 to vector<1x16xf32>
    %12 = arith.addf %9, %11 : vector<1x16xf32>
    %c0_11 = arith.constant 0 : index
    %c0_12 = arith.constant 0 : index
    %c0_13 = arith.constant 0 : index
    %13 = vector.load %arg4[%c0_11, %c0_12, %c0_13] : memref<1x1x16xf32, #tpu.memory_space<vmem>>, vector<1x1x16xf32>
    %14 = vector.shape_cast %13 : vector<1x1x16xf32> to vector<1x16xf32>
    %15 = vector.shape_cast %12 : vector<1x16xf32> to vector<1x1x16xf32>
    tpu.vector_store %arg4[%c0_11, %c0_12, %c0_13], %15 {strides = array<i32>} : memref<1x1x16xf32, #tpu.memory_space<vmem>>, vector<1x1x16xf32>,
    return
  }
  func.func @transform_0(%arg0: i32) -> (i32, i32, i32, i32) {
    %c0_i32 = arith.constant 0 : i32
    %c0_i32_0 = arith.constant 0 : i32
    %c0_i32_1 = arith.constant 0 : i32
    %c0_i32_2 = arith.constant 0 : i32
    return %arg0, %c0_i32, %c0_i32_0, %c0_i32_1 : i32, i32, i32, i32
  }
  func.func @transform_1(%arg0: i32) -> (i32, i32) {
    %c0_i32 = arith.constant 0 : i32
    %c0_i32_0 = arith.constant 0 : i32
    %c0_i32_1 = arith.constant 0 : i32
    return %c0_i32, %c0_i32_0 : i32, i32
  }
  func.func @transform_2(%arg0: i32) -> i32 {
    %c0_i32 = arith.constant 0 : i32
    %c0_i32_0 = arith.constant 0 : i32
    return %c0_i32 : i32
  }
  func.func @transform_3(%arg0: i32) -> (i32, i32, i32) {
    %c0_i32 = arith.constant 0 : i32
    %c0_i32_0 = arith.constant 0 : i32
    %c0_i32_1 = arith.constant 0 : i32
    return %arg0, %c0_i32, %c0_i32_0 : i32, i32, i32
  }
}

</mosaic_0001>

<llo_original>
// kernel: tpu_custom_call.1
$region0: #{tpu_custom_call.1}
  #allocation0 [shape = 'u32[]', space=smem, size = 0x4, offset = 0x4, fixed_abs, tag = 'smem constant byte address 0x4 - core index']
  #allocation1 [shape = 'u32[144,128]{1,0:T(1,128)}', space=vmem, size = 0x12000, scoped, tag = 'internal scratch']
  #allocation2 [shape = 'f32[1]{0:T(128)S(6)}', space=smem, size = 0x200, scoped, tag = 'scoped memory for tpu_custom_call.1']
  %s0 = inlined_call_operand.hbm [shape: f32[2,4,16,16], index: 0, kind: input, shape index: {}]
  %s1 = inlined_call_operand.vmem [shape: f32[32,16], index: 1, kind: input, shape index: {}]
  %s2 = inlined_call_operand.<no memory space> [shape: f32[1], index: 2, kind: input, shape index: {}]
  %s3 = inlined_call_operand.hbm [shape: f32[2,1,16], index: 3, kind: output, shape index: {}]
  %s4 = sld [smem:[#allocation0]]
  $region49: #{tpu_custom_call.1} parent=0
    _
  %s6 = ssub.s32 1, %s4
  %s7 = scalar_select 0, %s6, %s4
  %8 = sst [smem:[#allocation2]] %s2
  $region1: #{tpu_custom_call.1} parent=0
    #allocation3 [shape = 'u8[65536]{0}', space=vmem, size = 0x10000, scoped, tag = 'input window, operand 0']
    #allocation4 [shape = 's32[2]{0}', space=sflag, size = 0x8, scoped, tag = 'scoped memory for tpu_custom_call.1']
    #allocation5 [shape = 's32[2]{0}', space=sflag, size = 0x8, scoped, tag = 'scoped memory for tpu_custom_call.1']
    #allocation6 [shape = 'u8[1024]{0}', space=vmem, size = 0x400, scoped, tag = 'output window, operand 0']
    %9 = vsyncpa [#allocation4], 0
    %s10 = scalar_lea.sflag [#allocation4], 1
    %11 = vsyncpa %s10, 0
    %12 = vsyncpa [#allocation5], 0
    %s13 = scalar_lea.sflag [#allocation5], 1
    %14 = vsyncpa %s13, 0
    loop: start=0, step=1, limit=4
    $region2: #{tpu_custom_call.1} parent=1 // loop_pre_header
      _
    $region3: #{tpu_custom_call.1} parent=1 // loop_header
      %s16 = sphi 0, %s20
      %p17 = scmp.ge.s32.totalorder %s16, 4
      %s26 = sphi 0, %s28
      %s29 = sphi 0, %s26
      %s30 = sphi 0, %s29
      %s46 = sphi 0, %s30
      %s50 = sphi 0, %s50
      %s52 = sphi 0, %s50
      %s53 = sphi 0, %s52
      %s67 = sphi 0, %s53
      %s71 = sphi 0, %s71
      %s73 = sphi 0, %s71
      %s74 = sphi 0, %s73
      %s88 = sphi 0, %s74
      %s94 = sphi 0, %s96
      %s97 = sphi 0, %s94
      %s98 = sphi 0, %s97
      %s114 = sphi 0, %s98
    $region4: #{tpu_custom_call.1} parent=1 // loop_header_branch
      %19 = sbr.rel (%p17) target = $region8
    $region5: #{tpu_custom_call.1} parent=1 // loop_body
      %s21 = ssub.s32 %s16, 1
      %s22 = ssub.s32 %s16, 2
      %s23 = sadd.s32 %s16, 1
      %s24 = ssub.s32 %s16, %s23
      %p25 = scmp.eq.s32.totalorder %s24, 0
      %s27 = sadd.s32 %s26, 1
      %s28 = scalar_select %p25, %s26, %s27
      %p31 = pneg %p25
      %p32 = scmp.eq.s32.totalorder %s16, 1
      %p33 = por %p31, %p32
      %p34 = scmp.ne.s32.totalorder %s26, %s29
      %p35 = scmp.eq.s32.totalorder %s16, 0
      %p36 = por %p34, %p35
      %p37 = scmp.ne.s32.totalorder %s26, %s29
      %p38 = scmp.eq.s32.totalorder %s21, 1
      %p39 = por %p37, %p38
      %p40 = scmp.ne.s32.totalorder %s29, %s30
      %p41 = scmp.eq.s32.totalorder %s21, 0
      %p42 = por %p40, %p41
      %p43 = scmp.ne.s32.totalorder %s29, %s30
      %p44 = scmp.eq.s32.totalorder %s22, 1
      %p45 = por %p43, %p44
      %p47 = scmp.ne.s32.totalorder %s30, %s46
      %p48 = scmp.eq.s32.totalorder %s22, 0
      %p49 = por %p47, %p48
      %s51 = sadd.s32 %s50, 1
      %p54 = scmp.eq.s32.totalorder %s16, 1
      %p55 = scmp.ne.s32.totalorder %s50, %s52
      %p56 = scmp.eq.s32.totalorder %s16, 0
      %p57 = por %p55, %p56
      %p58 = scmp.ne.s32.totalorder %s50, %s52
      %p59 = scmp.eq.s32.totalorder %s21, 1
      %p60 = por %p58, %p59
      %p61 = scmp.ne.s32.totalorder %s52, %s53
      %p62 = scmp.eq.s32.totalorder %s21, 0
      %p63 = por %p61, %p62
      %p64 = scmp.ne.s32.totalorder %s52, %s53
      %p65 = scmp.eq.s32.totalorder %s22, 1
      %p66 = por %p64, %p65
      %p68 = scmp.ne.s32.totalorder %s53, %s67
      %p69 = scmp.eq.s32.totalorder %s22, 0
      %p70 = por %p68, %p69
      %s72 = sadd.s32 %s71, 1
      %p75 = scmp.eq.s32.totalorder %s16, 1
      %p76 = scmp.ne.s32.totalorder %s71, %s73
      %p77 = scmp.eq.s32.totalorder %s16, 0
      %p78 = por %p76, %p77
      %p79 = scmp.ne.s32.totalorder %s71, %s73
      %p80 = scmp.eq.s32.totalorder %s21, 1
      %p81 = por %p79, %p80
      %p82 = scmp.ne.s32.totalorder %s73, %s74
      %p83 = scmp.eq.s32.totalorder %s21, 0
      %p84 = por %p82, %p83
      %p85 = scmp.ne.s32.totalorder %s73, %s74
      %p86 = scmp.eq.s32.totalorder %s22, 1
      %p87 = por %p85, %p86
      %p89 = scmp.ne.s32.totalorder %s74, %s88
      %p90 = scmp.eq.s32.totalorder %s22, 0
      %p91 = por %p89, %p90
      %s92 = ssub.s32 %s16, %s23
      %p93 = scmp.eq.s32.totalorder %s92, 0
      %s95 = sadd.s32 %s94, 1
      %s96 = scalar_select %p93, %s94, %s95
      %p99 = pneg %p93
      %p100 = scmp.eq.s32.totalorder %s16, 1
      %p101 = por %p99, %p100
      %p102 = scmp.ne.s32.totalorder %s94, %s97
      %p103 = scmp.eq.s32.totalorder %s16, 0
      %p104 = por %p102, %p103
      %p105 = scmp.ne.s32.totalorder %s94, %s97
      %p106 = scmp.eq.s32.totalorder %s21, 1
      %p107 = por %p105, %p106
      %p108 = scmp.ne.s32.totalorder %s97, %s98
      %p109 = scmp.eq.s32.totalorder %s21, 0
      %p110 = por %p108, %p109
      %p111 = scmp.ne.s32.totalorder %s97, %s98
      %p112 = scmp.eq.s32.totalorder %s22, 1
      %p113 = por %p111, %p112
      %p115 = scmp.ne.s32.totalorder %s98, %s114
      %p116 = scmp.eq.s32.totalorder %s22, 0
      %p117 = por %p115, %p116
      %p118 = scmp.le.s32.totalorder 1, %s16
      %p119 = scmp.lt.s32.totalorder %s16, 3
      %p120 = pnand %p118, %p119
      %p121 = pneg %p120
      // Predicated region
      $region9: #{tpu_custom_call.1} parent=5 // pred_check
        _
      $region10: #{tpu_custom_call.1} parent=5 // pred_check_branch
        %123 = sbr.rel (%p120) target = $region12
      $region11: #{tpu_custom_call.1} parent=5 // pred_region
        %s124 = ssub.s32 %s16, 1
        // Predicated region
        $region13: #{tpu_custom_call.1} parent=11 // pred_check
          %p125 = pneg %p63
        $region14: #{tpu_custom_call.1} parent=11 // pred_check_branch
          %127 = sbr.rel (%p125) target = $region16
        $region15: #{tpu_custom_call.1} parent=11 // pred_region
          _
        $region16: #{tpu_custom_call.1} parent=11 // pred_fallthru
          _
        // Predicated region
        $region17: #{tpu_custom_call.1} parent=11 // pred_check
          %p128 = pneg %p84
        $region18: #{tpu_custom_call.1} parent=11 // pred_check_branch
          %130 = sbr.rel (%p128) target = $region20
        $region19: #{tpu_custom_call.1} parent=11 // pred_region
          _
        $region20: #{tpu_custom_call.1} parent=11 // pred_fallthru
          _
      $region12: #{tpu_custom_call.1} parent=5 // pred_fallthru
        _
      %p131 = scmp.lt.s32.totalorder %s16, 2
      // Predicated region
      $region21: #{tpu_custom_call.1} parent=5 // pred_check
        %p132 = pneg %p131
      $region22: #{tpu_custom_call.1} parent=5 // pred_check_branch
        %134 = sbr.rel (%p132) target = $region24
      $region23: #{tpu_custom_call.1} parent=5 // pred_region
        // Predicated region
        $region25: #{tpu_custom_call.1} parent=23 // pred_check
          %p135 = pneg %p36
        $region26: #{tpu_custom_call.1} parent=23 // pred_check_branch
          %137 = sbr.rel (%p135) target = $region28
        $region27: #{tpu_custom_call.1} parent=23 // pred_region
          %s138 = sand.u32 %s26, 1
          %s139 = scalar_lea.sflag [#allocation4], %s138
          %s140 = sand.u32 %s26, 1
          %s141 = smul.addr %s140, 64
          %s142 = scalar_lea.vmem [#allocation3], %s141
          %s144 = ssub.s32 1024, 1024
          %145 = vsyncadd %s139, %s144
          %s146 = smul.addr %s16, 8
          %s147 = smul.addr %s146, 128
          %s148 = scalar_lea.hbm %s0, %s147
          %s149 = sshll.u32 %s142, 4
          %s150 = int_to_ptr.vmem [resolvable:$true] %s149
          %155 = dma.hbm_to_vmem [thread:$0]  %s148, 1024, %s150, %s139, 128, 128, 8
        $region28: #{tpu_custom_call.1} parent=23 // pred_fallthru
          _
      $region24: #{tpu_custom_call.1} parent=5 // pred_fallthru
        _
      %p156 = scmp.le.s32.totalorder 1, %s16
      %p157 = scmp.lt.s32.totalorder %s16, 3
      %p158 = pnand %p156, %p157
      %p159 = pneg %p158
      // Predicated region
      $region29: #{tpu_custom_call.1} parent=5 // pred_check
        _
      $region30: #{tpu_custom_call.1} parent=5 // pred_check_branch
        %161 = sbr.rel (%p158) target = $region32
      $region31: #{tpu_custom_call.1} parent=5 // pred_region
        %s162 = ssub.s32 %s16, 1
        %s163 = sand.u32 %s29, 1
        %s164 = scalar_lea.sflag [#allocation4], %s163
        %s165 = sand.u32 %s29, 1
        %s166 = smul.addr %s165, 64
        %s167 = scalar_lea.vmem [#allocation3], %s166
        // Predicated region
        $region33: #{tpu_custom_call.1} parent=31 // pred_check
          %p168 = pneg %p42
        $region34: #{tpu_custom_call.1} parent=31 // pred_check_branch
          %170 = sbr.rel (%p168) target = $region36
        $region35: #{tpu_custom_call.1} parent=31 // pred_region
          %171 = dma.done %s164, 1024
        $region36: #{tpu_custom_call.1} parent=31 // pred_fallthru
          _
        %s172 = sand.u32 %s29, 1
        %s173 = scalar_lea.sflag [#allocation4], %s172
        %s174 = sand.u32 %s29, 1
        %s175 = smul.addr %s174, 64
        %s176 = scalar_lea.vmem [#allocation3], %s175
        %p177 = pneg %p42
        %p178 = pneg %p39
        %p179 = pneg %p63
        %p180 = pneg %p60
        %p181 = pneg %p84
        %p182 = pneg %p81
        %p183 = pneg %p110
        %p184 = pneg %p107
        %s185 = sand.u32 %s97, 1
        %s186 = scalar_lea.sflag [#allocation5], %s185
        %s187 = sand.u32 %s97, 1
        %s188 = scalar_lea.vmem [#allocation6], %s187
        %v189 = vld [vmem:[%s167] sm:$0xff]
        %v190 = vld [vmem:[%s167 + $0x8] sm:$0xff]
        %v191 = vld [vmem:[%s167 + $0x10] sm:$0xff]
        %v192 = vld [vmem:[%s167 + $0x18] sm:$0xff]
        %v193 = vld [vmem:[%s167 + $0x20] sm:$0xff]
        %v194 = vld [vmem:[%s167 + $0x28] sm:$0xff]
        %v195 = vld [vmem:[%s167 + $0x30] sm:$0xff]
        %v196 = vld [vmem:[%s167 + $0x38] sm:$0xff]
        %vm197 = vcmask 130048
        %v198 = vsel %vm197, %v189, 0.0
        %v199 = vsel %vm197, %v191, 0.0
        %v200 = vadd.f32 %v198, %v199
        %v201 = vsel %vm197, %v193, 0.0
        %v202 = vadd.f32 %v200, %v201
        %v203 = vsel %vm197, %v195, 0.0
        %v204 = vadd.f32 %v202, %v203
        %v205 = vsel %vm197, %v190, 0.0
        %v206 = vsel %vm197, %v192, 0.0
        %v207 = vadd.f32 %v205, %v206
        %v208 = vsel %vm197, %v194, 0.0
        %v209 = vadd.f32 %v207, %v208
        %v210 = vsel %vm197, %v196, 0.0
        %v211 = vadd.f32 %v209, %v210
        %v212 = vsel %vm197, %v204, 0.0
        %213 = vadd.xlane.f32.xlu0 %v212
        %v214 = vpop.xlane.xlu0 %213
        %v215 = vsel %vm197, %v211, 0.0
        %216 = vadd.xlane.f32.xlu0 %v215
        %v217 = vpop.xlane.xlu0 %216
        %v218 = vmul.f32 %v214, 0.015625
        %v219 = vmul.f32 %v217, 0.015625
        %v220 = vsel %vm197, %v189, -inf
        %v221 = vsel %vm197, %v191, -inf
        %v222 = vsel %vm197, %v193, -inf
        %v223 = vmax.f32 %v220, %v222
        %v224 = vsel %vm197, %v195, -inf
        %v225 = vmax.f32 %v221, %v224
        %v226 = vmax.f32 %v223, %v225
        %v227 = vsel %vm197, %v190, -inf
        %v228 = vsel %vm197, %v192, -inf
        %v229 = vsel %vm197, %v194, -inf
        %v230 = vmax.f32 %v227, %v229
        %v231 = vsel %vm197, %v196, -inf
        %v232 = vmax.f32 %v228, %v231
        %v233 = vmax.f32 %v230, %v232
        %v234 = vsel %vm197, %v226, -inf
        %235 = vmax.xlane.f32.xlu0 %v234
        %v236 = vpop.xlane.xlu0 %235
        %v237 = vsel %vm197, %v233, -inf
        %238 = vmax.xlane.f32.xlu0 %v237
        %v239 = vpop.xlane.xlu0 %238
        %v242 = vlaneseq
        %v243 = vand.u32 %v242, 127
        %v244 = vlaneseq
        %v245 = vshrl.u32 %v244, 7
        %v246 = vsub.s32 %v243, %v245
        %v247 = vrot.slane %v218, %v246
        %v248 = vadd.s32 %v243, 4294967288
        %v249 = vlaneseq
        %v250 = vshrl.u32 %v249, 7
        %v251 = vsub.s32 %v248, %v250
        %v252 = vrot.slane %v219, %v251
        %vm253 = vcmask 130112
        %v254 = vsel %vm253, %v252, %v247
        %v258 = vadd.s32 %v243, 4294967280
        %v259 = vlaneseq
        %v260 = vshrl.u32 %v259, 7
        %v261 = vsub.s32 %v258, %v260
        %v262 = vrot.slane %v236, %v261
        %v263 = vadd.s32 %v243, 4294967272
        %v264 = vlaneseq
        %v265 = vshrl.u32 %v264, 7
        %v266 = vsub.s32 %v263, %v265
        %v267 = vrot.slane %v239, %v266
        %vm268 = vcmask 261312
        %v269 = vsel %vm268, %v267, %v262
        %v271 = vsel %vm197, %v254, %v269
        %v272 = vld [vmem:[%s1] sm:$0xff]
        %v273 = vld [vmem:[%s1 + $0x8] sm:$0xff]
        %v274 = vld [vmem:[%s1 + $0x10] sm:$0xff]
        %v275 = vld [vmem:[%s1 + $0x18] sm:$0xff]
        %s276 = sld [smem:[#allocation2]]
        %v277 = vstv %s276
        %vm278 = vcmask 261120
        %v280 = vsel %vm278, %v271, 0
        %282 = vmatprep.subr.mxu0 0.0
        %v283 = vand.u32 %v272, 4294901760
        %284 = vmatpush1.msra.mxu0 %v283
        %285 = vmatprep.subr.mxu0 0.0
        %v286 = vand.u32 %v273, 4294901760
        %287 = vmatpush1.msra.mxu0 %v286
        %288 = vmatprep.subr.mxu0 0.0
        %v289 = vand.u32 %v274, 4294901760
        %290 = vmatpush1.msra.mxu0 %v289
        %291 = vmatprep.subr.mxu0 0.0
        %v292 = vand.u32 %v275, 4294901760
        %293 = vmatpush1.msra.mxu0 %v292
        %294 = vmatprep.subr.mxu0 0.0
        %295 = vmatpush1.msra.mxu0 0.0
        %296 = vmatprep.subr.mxu0 0.0
        %297 = vmatpush1.msra.mxu0 0.0
        %298 = vmatprep.subr.mxu0 0.0
        %299 = vmatpush1.msra.mxu0 0.0
        %300 = vmatprep.subr.mxu0 0.0
        %301 = vmatpush1.msra.mxu0 0.0
        %302 = vmatprep.subr.mxu0 0.0
        %303 = vmatpush1.msra.mxu0 0.0
        %304 = vmatprep.subr.mxu0 0.0
        %305 = vmatpush1.msra.mxu0 0.0
        %306 = vmatprep.subr.mxu0 0.0
        %307 = vmatpush1.msra.mxu0 0.0
        %308 = vmatprep.subr.mxu0 0.0
        %309 = vmatpush1.msra.mxu0 0.0
        %310 = vmatprep.subr.mxu0 0.0
        %311 = vmatpush1.msra.mxu0 0.0
        %312 = vmatprep.subr.mxu0 0.0
        %313 = vmatpush1.msra.mxu0 0.0
        %314 = vmatprep.subr.mxu0 0.0
        %315 = vmatpush1.msra.mxu0 0.0
        %316 = vmatprep.subr.mxu0 0.0
        %317 = vmatpush1.msra.mxu0 0.0
        %318 = vmatprep.subr.mxu0 0.0
        %319 = vmatpush1.msra.mxu0 0.0
        %320 = vmatprep.subr.mxu0 0.0
        %321 = vmatpush1.msra.mxu0 0.0
        %322 = vmatprep.subr.mxu0 0.0
        %323 = vmatpush1.msra.mxu0 0.0
        %324 = vmatprep.subr.mxu0 0.0
        %325 = vmatpush1.msra.mxu0 0.0
        %326 = vmatprep.subr.mxu0 0.0
        %327 = vmatpush1.msra.mxu0 0.0
        %328 = vmatprep.subr.mxu0 0.0
        %329 = vmatpush1.msra.mxu0 0.0
        %330 = vmatprep.subr.mxu0 0.0
        %331 = vmatpush1.msra.mxu0 0.0
        %332 = vmatprep.subr.mxu0 0.0
        %333 = vmatpush1.msra.mxu0 0.0
        %334 = vmatprep.subr.mxu0 0.0
        %335 = vmatpush1.msra.mxu0 0.0
        %336 = vmatprep.subr.mxu0 0.0
        %337 = vmatpush1.msra.mxu0 0.0
        %338 = vmatprep.subr.mxu0 0.0
        %339 = vmatpush1.msra.mxu0 0.0
        %340 = vmatprep.subr.mxu0 0.0
        %341 = vmatpush1.msra.mxu0 0.0
        %342 = vmatprep.subr.mxu0 0.0
        %343 = vmatpush1.msra.mxu0 0.0
        %344 = vmatprep.subr.mxu0 0.0
        %345 = vmatpush1.msra.mxu0 0.0
        %346 = vmatprep.subr.mxu0 0.0
        %347 = vmatpush1.msra.mxu0 0.0
        %348 = vmatprep.subr.mxu0 0.0
        %349 = vmatpush1.msra.mxu0 0.0
        %350 = vmatprep.mubr.f32.mxu0 0.0
        %v351 = vand.u32 %v280, 4294901760
        %v352 = vsub.f32 %v280, %v351
        %v353 = vand.u32 %v352, 4294901760
        %v354 = vsub.f32 %v352, %v353
        %v355 = vand.u32 %v354, 4294901760
        %356 = vmatmul.mubr.f32.gmra.mrb[0].mxu0 %v355
        %v357 = vpop.f32.mrb[0].mxu0
        %v358 = vadd.f32 %v277, %v357
        %v359 = vpop.f32.mrb[0].mxu0
        %360 = vdwg.mxu0
        %361 = vmatprep.subr.mxu0 0.0
        %v362 = vand.u32 %v272, 4294901760
        %v363 = vsub.f32 %v272, %v362
        %v364 = vand.u32 %v363, 4294901760
        %v365 = vsub.f32 %v363, %v364
        %v366 = vand.u32 %v365, 4294901760
        %367 = vmatpush1.msra.mxu0 %v366
        %368 = vmatprep.subr.mxu0 0.0
        %v369 = vand.u32 %v273, 4294901760
        %v370 = vsub.f32 %v273, %v369
        %v371 = vand.u32 %v370, 4294901760
        %v372 = vsub.f32 %v370, %v371
        %v373 = vand.u32 %v372, 4294901760
        %374 = vmatpush1.msra.mxu0 %v373
        %375 = vmatprep.subr.mxu0 0.0
        %v376 = vand.u32 %v274, 4294901760
        %v377 = vsub.f32 %v274, %v376
        %v378 = vand.u32 %v377, 4294901760
        %v379 = vsub.f32 %v377, %v378
        %v380 = vand.u32 %v379, 4294901760
        %381 = vmatpush1.msra.mxu0 %v380
        %382 = vmatprep.subr.mxu0 0.0
        %v383 = vand.u32 %v275, 4294901760
        %v384 = vsub.f32 %v275, %v383
        %v385 = vand.u32 %v384, 4294901760
        %v386 = vsub.f32 %v384, %v385
        %v387 = vand.u32 %v386, 4294901760
        %388 = vmatpush1.msra.mxu0 %v387
        %389 = vmatprep.subr.mxu0 0.0
        %390 = vmatpush1.msra.mxu0 0.0
        %391 = vmatprep.subr.mxu0 0.0
        %392 = vmatpush1.msra.mxu0 0.0
        %393 = vmatprep.subr.mxu0 0.0
        %394 = vmatpush1.msra.mxu0 0.0
        %395 = vmatprep.subr.mxu0 0.0
        %396 = vmatpush1.msra.mxu0 0.0
        %397 = vmatprep.subr.mxu0 0.0
        %398 = vmatpush1.msra.mxu0 0.0
        %399 = vmatprep.subr.mxu0 0.0
        %400 = vmatpush1.msra.mxu0 0.0
        %401 = vmatprep.subr.mxu0 0.0
        %402 = vmatpush1.msra.mxu0 0.0
        %403 = vmatprep.subr.mxu0 0.0
        %404 = vmatpush1.msra.mxu0 0.0
        %405 = vmatprep.subr.mxu0 0.0
        %406 = vmatpush1.msra.mxu0 0.0
        %407 = vmatprep.subr.mxu0 0.0
        %408 = vmatpush1.msra.mxu0 0.0
        %409 = vmatprep.subr.mxu0 0.0
        %410 = vmatpush1.msra.mxu0 0.0
        %411 = vmatprep.subr.mxu0 0.0
        %412 = vmatpush1.msra.mxu0 0.0
        %413 = vmatprep.subr.mxu0 0.0
        %414 = vmatpush1.msra.mxu0 0.0
        %415 = vmatprep.subr.mxu0 0.0
        %416 = vmatpush1.msra.mxu0 0.0
        %417 = vmatprep.subr.mxu0 0.0
        %418 = vmatpush1.msra.mxu0 0.0
        %419 = vmatprep.subr.mxu0 0.0
        %420 = vmatpush1.msra.mxu0 0.0
        %421 = vmatprep.subr.mxu0 0.0
        %422 = vmatpush1.msra.mxu0 0.0
        %423 = vmatprep.subr.mxu0 0.0
        %424 = vmatpush1.msra.mxu0 0.0
        %425 = vmatprep.subr.mxu0 0.0
        %426 = vmatpush1.msra.mxu0 0.0
        %427 = vmatprep.subr.mxu0 0.0
        %428 = vmatpush1.msra.mxu0 0.0
        %429 = vmatprep.subr.mxu0 0.0
        %430 = vmatpush1.msra.mxu0 0.0
        %431 = vmatprep.subr.mxu0 0.0
        %432 = vmatpush1.msra.mxu0 0.0
        %433 = vmatprep.subr.mxu0 0.0
        %434 = vmatpush1.msra.mxu0 0.0
        %435 = vmatprep.subr.mxu0 0.0
        %436 = vmatpush1.msra.mxu0 0.0
        %437 = vmatprep.subr.mxu0 0.0
        %438 = vmatpush1.msra.mxu0 0.0
        %439 = vmatprep.subr.mxu0 0.0
        %440 = vmatpush1.msra.mxu0 0.0
        %441 = vmatprep.subr.mxu0 0.0
        %442 = vmatpush1.msra.mxu0 0.0
        %443 = vmatprep.subr.mxu0 0.0
        %444 = vmatpush1.msra.mxu0 0.0
        %445 = vmatprep.mubr.f32.mxu0 0.0
        %v446 = vand.u32 %v280, 4294901760
        %447 = vmatmul.mubr.f32.gmra.mrb[0].mxu0 %v446
        %v448 = vpop.f32.mrb[0].mxu0
        %v449 = vadd.f32 %v358, %v448
        %v450 = vpop.f32.mrb[0].mxu0
        %451 = vdwg.mxu0
        %452 = vmatprep.subr.mxu0 0.0
        %v453 = vand.u32 %v272, 4294901760
        %v454 = vsub.f32 %v272, %v453
        %455 = vmatpush1.msra.mxu0 %v454
        %456 = vmatprep.subr.mxu0 0.0
        %v457 = vand.u32 %v273, 4294901760
        %v458 = vsub.f32 %v273, %v457
        %459 = vmatpush1.msra.mxu0 %v458
        %460 = vmatprep.subr.mxu0 0.0
        %v461 = vand.u32 %v274, 4294901760
        %v462 = vsub.f32 %v274, %v461
        %463 = vmatpush1.msra.mxu0 %v462
        %464 = vmatprep.subr.mxu0 0.0
        %v465 = vand.u32 %v275, 4294901760
        %v466 = vsub.f32 %v275, %v465
        %467 = vmatpush1.msra.mxu0 %v466
        %468 = vmatprep.subr.mxu0 0.0
        %469 = vmatpush1.msra.mxu0 0.0
        %470 = vmatprep.subr.mxu0 0.0
        %471 = vmatpush1.msra.mxu0 0.0
        %472 = vmatprep.subr.mxu0 0.0
        %473 = vmatpush1.msra.mxu0 0.0
        %474 = vmatprep.subr.mxu0 0.0
        %475 = vmatpush1.msra.mxu0 0.0
        %476 = vmatprep.subr.mxu0 0.0
        %477 = vmatpush1.msra.mxu0 0.0
        %478 = vmatprep.subr.mxu0 0.0
        %479 = vmatpush1.msra.mxu0 0.0
        %480 = vmatprep.subr.mxu0 0.0
        %481 = vmatpush1.msra.mxu0 0.0
        %482 = vmatprep.subr.mxu0 0.0
        %483 = vmatpush1.msra.mxu0 0.0
        %484 = vmatprep.subr.mxu0 0.0
        %485 = vmatpush1.msra.mxu0 0.0
        %486 = vmatprep.subr.mxu0 0.0
        %487 = vmatpush1.msra.mxu0 0.0
        %488 = vmatprep.subr.mxu0 0.0
        %489 = vmatpush1.msra.mxu0 0.0
        %490 = vmatprep.subr.mxu0 0.0
        %491 = vmatpush1.msra.mxu0 0.0
        %492 = vmatprep.subr.mxu0 0.0
        %493 = vmatpush1.msra.mxu0 0.0
        %494 = vmatprep.subr.mxu0 0.0
        %495 = vmatpush1.msra.mxu0 0.0
        %496 = vmatprep.subr.mxu0 0.0
        %497 = vmatpush1.msra.mxu0 0.0
        %498 = vmatprep.subr.mxu0 0.0
        %499 = vmatpush1.msra.mxu0 0.0
        %500 = vmatprep.subr.mxu0 0.0
        %501 = vmatpush1.msra.mxu0 0.0
        %502 = vmatprep.subr.mxu0 0.0
        %503 = vmatpush1.msra.mxu0 0.0
        %504 = vmatprep.subr.mxu0 0.0
        %505 = vmatpush1.msra.mxu0 0.0
        %506 = vmatprep.subr.mxu0 0.0
        %507 = vmatpush1.msra.mxu0 0.0
        %508 = vmatprep.subr.mxu0 0.0
        %509 = vmatpush1.msra.mxu0 0.0
        %510 = vmatprep.subr.mxu0 0.0
        %511 = vmatpush1.msra.mxu0 0.0
        %512 = vmatprep.subr.mxu0 0.0
        %513 = vmatpush1.msra.mxu0 0.0
        %514 = vmatprep.subr.mxu0 0.0
        %515 = vmatpush1.msra.mxu0 0.0
        %516 = vmatprep.subr.mxu0 0.0
        %517 = vmatpush1.msra.mxu0 0.0
        %518 = vmatprep.subr.mxu0 0.0
        %519 = vmatpush1.msra.mxu0 0.0
        %520 = vmatprep.subr.mxu0 0.0
        %521 = vmatpush1.msra.mxu0 0.0
        %522 = vmatprep.subr.mxu0 0.0
        %523 = vmatpush1.msra.mxu0 0.0
        %524 = vmatprep.mubr.f32.mxu0 0.0
        %v525 = vand.u32 %v280, 4294901760
        %v526 = vsub.f32 %v280, %v525
        %527 = vmatmul.mubr.f32.gmra.mrb[0].mxu0 %v526
        %v528 = vpop.f32.mrb[0].mxu0
        %v529 = vadd.f32 %v449, %v528
        %v530 = vpop.f32.mrb[0].mxu0
        %531 = vdwg.mxu0
        %532 = vmatprep.subr.mxu0 0.0
        %v533 = vand.u32 %v272, 4294901760
        %534 = vmatpush1.msra.mxu0 %v533
        %535 = vmatprep.subr.mxu0 0.0
        %v536 = vand.u32 %v273, 4294901760
        %537 = vmatpush1.msra.mxu0 %v536
        %538 = vmatprep.subr.mxu0 0.0
        %v539 = vand.u32 %v274, 4294901760
        %540 = vmatpush1.msra.mxu0 %v539
        %541 = vmatprep.subr.mxu0 0.0
        %v542 = vand.u32 %v275, 4294901760
        %543 = vmatpush1.msra.mxu0 %v542
        %544 = vmatprep.subr.mxu0 0.0
        %545 = vmatpush1.msra.mxu0 0.0
        %546 = vmatprep.subr.mxu0 0.0
        %547 = vmatpush1.msra.mxu0 0.0
        %548 = vmatprep.subr.mxu0 0.0
        %549 = vmatpush1.msra.mxu0 0.0
        %550 = vmatprep.subr.mxu0 0.0
        %551 = vmatpush1.msra.mxu0 0.0
        %552 = vmatprep.subr.mxu0 0.0
        %553 = vmatpush1.msra.mxu0 0.0
        %554 = vmatprep.subr.mxu0 0.0
        %555 = vmatpush1.msra.mxu0 0.0
        %556 = vmatprep.subr.mxu0 0.0
        %557 = vmatpush1.msra.mxu0 0.0
        %558 = vmatprep.subr.mxu0 0.0
        %559 = vmatpush1.msra.mxu0 0.0
        %560 = vmatprep.subr.mxu0 0.0
        %561 = vmatpush1.msra.mxu0 0.0
        %562 = vmatprep.subr.mxu0 0.0
        %563 = vmatpush1.msra.mxu0 0.0
        %564 = vmatprep.subr.mxu0 0.0
        %565 = vmatpush1.msra.mxu0 0.0
        %566 = vmatprep.subr.mxu0 0.0
        %567 = vmatpush1.msra.mxu0 0.0
        %568 = vmatprep.subr.mxu0 0.0
        %569 = vmatpush1.msra.mxu0 0.0
        %570 = vmatprep.subr.mxu0 0.0
        %571 = vmatpush1.msra.mxu0 0.0
        %572 = vmatprep.subr.mxu0 0.0
        %573 = vmatpush1.msra.mxu0 0.0
        %574 = vmatprep.subr.mxu0 0.0
        %575 = vmatpush1.msra.mxu0 0.0
        %576 = vmatprep.subr.mxu0 0.0
        %577 = vmatpush1.msra.mxu0 0.0
        %578 = vmatprep.subr.mxu0 0.0
        %579 = vmatpush1.msra.mxu0 0.0
        %580 = vmatprep.subr.mxu0 0.0
        %581 = vmatpush1.msra.mxu0 0.0
        %582 = vmatprep.subr.mxu0 0.0
        %583 = vmatpush1.msra.mxu0 0.0
        %584 = vmatprep.subr.mxu0 0.0
        %585 = vmatpush1.msra.mxu0 0.0
        %586 = vmatprep.subr.mxu0 0.0
        %587 = vmatpush1.msra.mxu0 0.0
        %588 = vmatprep.subr.mxu0 0.0
        %589 = vmatpush1.msra.mxu0 0.0
        %590 = vmatprep.subr.mxu0 0.0
        %591 = vmatpush1.msra.mxu0 0.0
        %592 = vmatprep.subr.mxu0 0.0
        %593 = vmatpush1.msra.mxu0 0.0
        %594 = vmatprep.subr.mxu0 0.0
        %595 = vmatpush1.msra.mxu0 0.0
        %596 = vmatprep.subr.mxu0 0.0
        %597 = vmatpush1.msra.mxu0 0.0
        %598 = vmatprep.subr.mxu0 0.0
        %599 = vmatpush1.msra.mxu0 0.0
        %600 = vmatprep.mubr.f32.mxu0 0.0
        %v601 = vand.u32 %v280, 4294901760
        %v602 = vsub.f32 %v280, %v601
        %v603 = vand.u32 %v602, 4294901760
        %604 = vmatmul.mubr.f32.gmra.mrb[0].mxu0 %v603
        %v605 = vpop.f32.mrb[0].mxu0
        %v606 = vadd.f32 %v529, %v605
        %v607 = vpop.f32.mrb[0].mxu0
        %608 = vdwg.mxu0
        %609 = vmatprep.subr.mxu0 0.0
        %v610 = vand.u32 %v272, 4294901760
        %v611 = vsub.f32 %v272, %v610
        %v612 = vand.u32 %v611, 4294901760
        %613 = vmatpush1.msra.mxu0 %v612
        %614 = vmatprep.subr.mxu0 0.0
        %v615 = vand.u32 %v273, 4294901760
        %v616 = vsub.f32 %v273, %v615
        %v617 = vand.u32 %v616, 4294901760
        %618 = vmatpush1.msra.mxu0 %v617
        %619 = vmatprep.subr.mxu0 0.0
        %v620 = vand.u32 %v274, 4294901760
        %v621 = vsub.f32 %v274, %v620
        %v622 = vand.u32 %v621, 4294901760
        %623 = vmatpush1.msra.mxu0 %v622
        %624 = vmatprep.subr.mxu0 0.0
        %v625 = vand.u32 %v275, 4294901760
        %v626 = vsub.f32 %v275, %v625
        %v627 = vand.u32 %v626, 4294901760
        %628 = vmatpush1.msra.mxu0 %v627
        %629 = vmatprep.subr.mxu0 0.0
        %630 = vmatpush1.msra.mxu0 0.0
        %631 = vmatprep.subr.mxu0 0.0
        %632 = vmatpush1.msra.mxu0 0.0
        %633 = vmatprep.subr.mxu0 0.0
        %634 = vmatpush1.msra.mxu0 0.0
        %635 = vmatprep.subr.mxu0 0.0
        %636 = vmatpush1.msra.mxu0 0.0
        %637 = vmatprep.subr.mxu0 0.0
        %638 = vmatpush1.msra.mxu0 0.0
        %639 = vmatprep.subr.mxu0 0.0
        %640 = vmatpush1.msra.mxu0 0.0
        %641 = vmatprep.subr.mxu0 0.0
        %642 = vmatpush1.msra.mxu0 0.0
        %643 = vmatprep.subr.mxu0 0.0
        %644 = vmatpush1.msra.mxu0 0.0
        %645 = vmatprep.subr.mxu0 0.0
        %646 = vmatpush1.msra.mxu0 0.0
        %647 = vmatprep.subr.mxu0 0.0
        %648 = vmatpush1.msra.mxu0 0.0
        %649 = vmatprep.subr.mxu0 0.0
        %650 = vmatpush1.msra.mxu0 0.0
        %651 = vmatprep.subr.mxu0 0.0
        %652 = vmatpush1.msra.mxu0 0.0
        %653 = vmatprep.subr.mxu0 0.0
        %654 = vmatpush1.msra.mxu0 0.0
        %655 = vmatprep.subr.mxu0 0.0
        %656 = vmatpush1.msra.mxu0 0.0
        %657 = vmatprep.subr.mxu0 0.0
        %658 = vmatpush1.msra.mxu0 0.0
        %659 = vmatprep.subr.mxu0 0.0
        %660 = vmatpush1.msra.mxu0 0.0
        %661 = vmatprep.subr.mxu0 0.0
        %662 = vmatpush1.msra.mxu0 0.0
        %663 = vmatprep.subr.mxu0 0.0
        %664 = vmatpush1.msra.mxu0 0.0
        %665 = vmatprep.subr.mxu0 0.0
        %666 = vmatpush1.msra.mxu0 0.0
        %667 = vmatprep.subr.mxu0 0.0
        %668 = vmatpush1.msra.mxu0 0.0
        %669 = vmatprep.subr.mxu0 0.0
        %670 = vmatpush1.msra.mxu0 0.0
        %671 = vmatprep.subr.mxu0 0.0
        %672 = vmatpush1.msra.mxu0 0.0
        %673 = vmatprep.subr.mxu0 0.0
        %674 = vmatpush1.msra.mxu0 0.0
        %675 = vmatprep.subr.mxu0 0.0
        %676 = vmatpush1.msra.mxu0 0.0
        %677 = vmatprep.subr.mxu0 0.0
        %678 = vmatpush1.msra.mxu0 0.0
        %679 = vmatprep.subr.mxu0 0.0
        %680 = vmatpush1.msra.mxu0 0.0
        %681 = vmatprep.subr.mxu0 0.0
        %682 = vmatpush1.msra.mxu0 0.0
        %683 = vmatprep.subr.mxu0 0.0
        %684 = vmatpush1.msra.mxu0 0.0
        %685 = vmatprep.mubr.f32.mxu0 0.0
        %v686 = vand.u32 %v280, 4294901760
        %687 = vmatmul.mubr.f32.gmra.mrb[0].mxu0 %v686
        %v688 = vpop.f32.mrb[0].mxu0
        %v689 = vadd.f32 %v606, %v688
        %v690 = vpop.f32.mrb[0].mxu0
        %691 = vdwg.mxu0
        %692 = vmatprep.subr.mxu0 0.0
        %v693 = vand.u32 %v272, 4294901760
        %694 = vmatpush1.msra.mxu0 %v693
        %695 = vmatprep.subr.mxu0 0.0
        %v696 = vand.u32 %v273, 4294901760
        %697 = vmatpush1.msra.mxu0 %v696
        %698 = vmatprep.subr.mxu0 0.0
        %v699 = vand.u32 %v274, 4294901760
        %700 = vmatpush1.msra.mxu0 %v699
        %701 = vmatprep.subr.mxu0 0.0
        %v702 = vand.u32 %v275, 4294901760
        %703 = vmatpush1.msra.mxu0 %v702
        %704 = vmatprep.subr.mxu0 0.0
        %705 = vmatpush1.msra.mxu0 0.0
        %706 = vmatprep.subr.mxu0 0.0
        %707 = vmatpush1.msra.mxu0 0.0
        %708 = vmatprep.subr.mxu0 0.0
        %709 = vmatpush1.msra.mxu0 0.0
        %710 = vmatprep.subr.mxu0 0.0
        %711 = vmatpush1.msra.mxu0 0.0
        %712 = vmatprep.subr.mxu0 0.0
        %713 = vmatpush1.msra.mxu0 0.0
        %714 = vmatprep.subr.mxu0 0.0
        %715 = vmatpush1.msra.mxu0 0.0
        %716 = vmatprep.subr.mxu0 0.0
        %717 = vmatpush1.msra.mxu0 0.0
        %718 = vmatprep.subr.mxu0 0.0
        %719 = vmatpush1.msra.mxu0 0.0
        %720 = vmatprep.subr.mxu0 0.0
        %721 = vmatpush1.msra.mxu0 0.0
        %722 = vmatprep.subr.mxu0 0.0
        %723 = vmatpush1.msra.mxu0 0.0
        %724 = vmatprep.subr.mxu0 0.0
        %725 = vmatpush1.msra.mxu0 0.0
        %726 = vmatprep.subr.mxu0 0.0
        %727 = vmatpush1.msra.mxu0 0.0
        %728 = vmatprep.subr.mxu0 0.0
        %729 = vmatpush1.msra.mxu0 0.0
        %730 = vmatprep.subr.mxu0 0.0
        %731 = vmatpush1.msra.mxu0 0.0
        %732 = vmatprep.subr.mxu0 0.0
        %733 = vmatpush1.msra.mxu0 0.0
        %734 = vmatprep.subr.mxu0 0.0
        %735 = vmatpush1.msra.mxu0 0.0
        %736 = vmatprep.subr.mxu0 0.0
        %737 = vmatpush1.msra.mxu0 0.0
        %738 = vmatprep.subr.mxu0 0.0
        %739 = vmatpush1.msra.mxu0 0.0
        %740 = vmatprep.subr.mxu0 0.0
        %741 = vmatpush1.msra.mxu0 0.0
        %742 = vmatprep.subr.mxu0 0.0
        %743 = vmatpush1.msra.mxu0 0.0
        %744 = vmatprep.subr.mxu0 0.0
        %745 = vmatpush1.msra.mxu0 0.0
        %746 = vmatprep.subr.mxu0 0.0
        %747 = vmatpush1.msra.mxu0 0.0
        %748 = vmatprep.subr.mxu0 0.0
        %749 = vmatpush1.msra.mxu0 0.0
        %750 = vmatprep.subr.mxu0 0.0
        %751 = vmatpush1.msra.mxu0 0.0
        %752 = vmatprep.subr.mxu0 0.0
        %753 = vmatpush1.msra.mxu0 0.0
        %754 = vmatprep.subr.mxu0 0.0
        %755 = vmatpush1.msra.mxu0 0.0
        %756 = vmatprep.subr.mxu0 0.0
        %757 = vmatpush1.msra.mxu0 0.0
        %758 = vmatprep.subr.mxu0 0.0
        %759 = vmatpush1.msra.mxu0 0.0
        %760 = vmatprep.mubr.f32.mxu0 0.0
        %v761 = vand.u32 %v280, 4294901760
        %762 = vmatmul.mubr.f32.gmra.mrb[0].mxu0 %v761
        %v763 = vpop.f32.mrb[0].mxu0
        %v764 = vadd.f32 %v689, %v763
        %v765 = vpop.f32.mrb[0].mxu0
        %766 = vdwg.mxu0
        %vm767 = vcmask 122880
        %768 = vst.msk [vmem:[%s188] sm:$0x1] %vm767, %v764
        %s769 = sand.u32 %s97, 1
        %s770 = scalar_lea.sflag [#allocation5], %s769
        %s771 = sand.u32 %s97, 1
        %s772 = scalar_lea.vmem [#allocation6], %s771
        // Predicated region
        $region37: #{tpu_custom_call.1} parent=31 // pred_check
          %p773 = pneg %p107
        $region38: #{tpu_custom_call.1} parent=31 // pred_check_branch
          %775 = sbr.rel (%p773) target = $region40
        $region39: #{tpu_custom_call.1} parent=31 // pred_region
          %s777 = ssub.s32 16, 16
          %778 = vsyncadd %s770, %s777
          %s779 = smul.addr %s21, 16
          %s780 = scalar_lea.hbm %s3, %s779
          %s782 = sshll.u32 %s772, 4
          %s783 = int_to_ptr.vmem [resolvable:$true] %s782
          %785 = dma.vmem_to_hbm [thread:$0]  %s783, 16, %s780, %s770
        $region40: #{tpu_custom_call.1} parent=31 // pred_fallthru
          _
      $region32: #{tpu_custom_call.1} parent=5 // pred_fallthru
        _
      %p786 = scmp.le.s32.totalorder 2, %s16
      // Predicated region
      $region41: #{tpu_custom_call.1} parent=5 // pred_check
        %p787 = pneg %p786
      $region42: #{tpu_custom_call.1} parent=5 // pred_check_branch
        %789 = sbr.rel (%p787) target = $region44
      $region43: #{tpu_custom_call.1} parent=5 // pred_region
        %s790 = ssub.s32 %s16, 2
        // Predicated region
        $region45: #{tpu_custom_call.1} parent=43 // pred_check
          %p791 = pneg %p113
        $region46: #{tpu_custom_call.1} parent=43 // pred_check_branch
          %793 = sbr.rel (%p791) target = $region48
        $region47: #{tpu_custom_call.1} parent=43 // pred_region
          %s794 = sand.u32 %s98, 1
          %s795 = scalar_lea.sflag [#allocation5], %s794
          %s796 = sand.u32 %s98, 1
          %s797 = scalar_lea.vmem [#allocation6], %s796
          %798 = dma.done %s795, 16
        $region48: #{tpu_custom_call.1} parent=43 // pred_fallthru
          _
      $region44: #{tpu_custom_call.1} parent=5 // pred_fallthru
        _
    $region6: #{tpu_custom_call.1} parent=1 // loop_footer
      %s20 = sadd.s32 1, %s16
    $region7: #{tpu_custom_call.1} parent=1 // loop_footer_branch
      %15 = sbr.rel target = $region3
    $region8: #{tpu_custom_call.1} parent=1 // loop_exit
      _
    %799 = vsyncpa [#allocation4], 1
    %s800 = scalar_lea.sflag [#allocation4], 1
    %801 = vsyncpa %s800, 1
    %802 = vsyncpa [#allocation5], 1
    %s803 = scalar_lea.sflag [#allocation5], 1
    %804 = vsyncpa %s803, 1

</llo_original>
